<compile_context>
chip_gen: v5e
topology: v5e:2x2
jax: 0.10.0
libtpu: 0.0.40
codegen_flags: <defaults>
</compile_context>

<pallas_src>
import jax
import jax.numpy as jnp
from jax.experimental import pallas as pl
from jax.experimental.pallas import tpu as pltpu


def _round_up(x: int, m: int) -> int:
    return (x + m - 1) // m * m


def _hinge_loss_kernel(out_ref, tgt_ref, hinge_ref, acc_ref):
    """One (TB, TD) tile: accumulate row dot-products; apply hinge at last D step."""
    j = pl.program_id(1)

    @pl.when(j == 0)
    def _():
        acc_ref[...] = jnp.zeros_like(acc_ref)

    # Upcast in-kernel (inputs arrive in native dtype); VPU multiply + lane reduce.
    prod = out_ref[...].astype(jnp.float32) * tgt_ref[...].astype(jnp.float32)
    acc_ref[...] += jnp.sum(prod, axis=1, keepdims=True)

    @pl.when(j == pl.num_programs(1) - 1)
    def _():
        hinge_ref[...] = jnp.maximum(jnp.float32(0.1) - acc_ref[...], 0.0)


def hinge_loss(outputs: jax.Array, target_wvs: jax.Array,
               *, tb_cap: int = 512, td_cap: int = 2048) -> jax.Array:
    """Pallas TPU HingeLoss forward. outputs/target_wvs: [B, D]; returns scalar f32."""
    assert outputs.shape == target_wvs.shape
    B, D = outputs.shape

    # Tile sizes: (8,128)-aligned, capped so 2 inputs x 2 pipeline buffers fit VMEM
    # comfortably on all generations (incl. v7x's 64 MiB).
    TB = min(_round_up(B, 8), tb_cap)
    TD = min(_round_up(D, 128), td_cap)
    B_pad = _round_up(B, TB)
    D_pad = _round_up(D, TD)

    if (B_pad, D_pad) != (B, D):
        # Zero padding contributes 0 to every row dot-product (safe pre-hinge).
        pad = ((0, B_pad - B), (0, D_pad - D))
        outputs = jnp.pad(outputs, pad)
        target_wvs = jnp.pad(target_wvs, pad)

    nb, nd = B_pad // TB, D_pad // TD
    itemsize = jnp.dtype(outputs.dtype).itemsize

    hinge_rows = pl.pallas_call(
        _hinge_loss_kernel,
        out_shape=jax.ShapeDtypeStruct((B_pad, 1), jnp.float32),
        grid_spec=pltpu.PrefetchScalarGridSpec(
            num_scalar_prefetch=0,
            grid=(nb, nd),
            in_specs=[
                pl.BlockSpec((TB, TD), lambda i, j: (i, j)),
                pl.BlockSpec((TB, TD), lambda i, j: (i, j)),
            ],
            out_specs=pl.BlockSpec((TB, 1), lambda i, j: (i, 0)),
            scratch_shapes=[pltpu.VMEM((TB, 1), jnp.float32)],
        ),
        compiler_params=pltpu.CompilerParams(
            dimension_semantics=("parallel", "arbitrary"),
            vmem_limit_bytes=48 * 1024 * 1024,
        ),
        cost_estimate=pl.CostEstimate(
            flops=2 * B_pad * D_pad,
            transcendentals=0,
            bytes_accessed=2 * B_pad * D_pad * itemsize + B_pad * 4,
        ),
    )(outputs, target_wvs)

    # Drop padded rows (they'd each contribute margin=0.1), then mean over true B.
    return jnp.sum(hinge_rows[:B, 0]) / jnp.float32(B)


def hinge_loss_ref(outputs, target_wvs):
    margin = 0.1
    td = jnp.sum(outputs.astype(jnp.float32) * target_wvs.astype(jnp.float32), axis=1)
    return jnp.sum(jnp.maximum(margin - td, 0.0)) / outputs.shape[0]


if __name__ == "__main__":
    key = jax.random.PRNGKey(0)
    k1, k2, k3, k4 = jax.random.split(key, 4)

    # Test 1: tiny module-sized shape (D=32 is padded to a lane-dense 128 inside).
    B, D = 8, 32
    out1 = jax.random.normal(k1, (B, D), dtype=jnp.float32)
    tgt1 = jax.random.normal(k2, (B, D), dtype=jnp.float32)
    loss1 = hinge_loss(out1, tgt1)
    jax.block_until_ready(loss1)
    exp1 = hinge_loss_ref(out1, tgt1)
    assert jnp.allclose(loss1, exp1, rtol=1e-5, atol=1e-6), (loss1, exp1)

    # Test 2: exercise the tiled path (grid 3x3, B/D remainders, multi-step D
    # accumulation) with bf16 inputs read natively and accumulated in f32.
    B2, D2 = 20, 300
    out2 = jax.random.normal(k3, (B2, D2), dtype=jnp.bfloat16)
    tgt2 = jax.random.normal(k4, (B2, D2), dtype=jnp.bfloat16)
    loss2 = hinge_loss(out2, tgt2, tb_cap=8, td_cap=128)
    jax.block_until_ready(loss2)
    exp2 = hinge_loss_ref(out2, tgt2)
    assert jnp.allclose(loss2, exp2, rtol=1e-4, atol=1e-4), (loss2, exp2)

    print("KERNEL_OK")
</pallas_src>

<mosaic_0001>
module attributes {stable_mosaic.version = 11 : i64} {
  func.func @_hinge_loss_kernel(%arg0: i32, %arg1: i32, %arg2: memref<8x128xf32, #tpu.memory_space<vmem>>, %arg3: memref<8x128xf32, #tpu.memory_space<vmem>>, %arg4: memref<8x1xf32, #tpu.memory_space<vmem>>, %arg5: memref<8x1xf32, #tpu.memory_space<vmem>>) attributes {dimension_semantics = [#tpu.dimension_semantics<parallel>, #tpu.dimension_semantics<arbitrary>], iteration_bounds = array<i64: 1, 1>, scalar_prefetch = 0 : i64, scratch_operands = 1 : i64, tpu.core_type = #tpu.core_type<tc>, window_params = [{transform_indices = @transform_0, window_bounds = array<i64: 8, 128>}, {transform_indices = @transform_1, window_bounds = array<i64: 8, 128>}, {transform_indices = @transform_2, window_bounds = array<i64: 8, 1>}]} {
    %c0_i32 = arith.constant 0 : i32
    %0 = arith.cmpi eq, %arg1, %c0_i32 : i32
    %1 = arith.extui %0 : i1 to i32
    %c0_i32_0 = arith.constant 0 : i32
    %2 = arith.cmpi ne, %1, %c0_i32_0 : i32
    scf.if %2 {
      %cst_10 = arith.constant 0.000000e+00 : f32
      %14 = vector.broadcast %cst_10 : f32 to vector<8x1xf32>
      %c0_11 = arith.constant 0 : index
      %c0_12 = arith.constant 0 : index
      %15 = vector.load %arg5[%c0_11, %c0_12] : memref<8x1xf32, #tpu.memory_space<vmem>>, vector<8x1xf32>
      tpu.vector_store %arg5[%c0_11, %c0_12], %14 {strides = array<i32>} : memref<8x1xf32, #tpu.memory_space<vmem>>, vector<8x1xf32>,
    } else {
    }
    %c0 = arith.constant 0 : index
    %c0_1 = arith.constant 0 : index
    %3 = vector.load %arg2[%c0, %c0_1] : memref<8x128xf32, #tpu.memory_space<vmem>>, vector<8x128xf32>
    %c0_2 = arith.constant 0 : index
    %c0_3 = arith.constant 0 : index
    %4 = vector.load %arg3[%c0_2, %c0_3] : memref<8x128xf32, #tpu.memory_space<vmem>>, vector<8x128xf32>
    %5 = arith.mulf %3, %4 : vector<8x128xf32>
    %c0_4 = arith.constant 0 : index
    %c0_5 = arith.constant 0 : index
    %6 = vector.load %arg5[%c0_4, %c0_5] : memref<8x1xf32, #tpu.memory_space<vmem>>, vector<8x1xf32>
    %cst = arith.constant dense<0.000000e+00> : vector<8xf32>
    %7 = vector.multi_reduction <add>, %5, %cst [1] : vector<8x128xf32> to vector<8xf32>
    %8 = vector.shape_cast %7 : vector<8xf32> to vector<8x1xf32>
    %9 = arith.addf %6, %8 : vector<8x1xf32>
    %c0_6 = arith.constant 0 : index
    %c0_7 = arith.constant 0 : index
    %10 = vector.load %arg5[%c0_6, %c0_7] : memref<8x1xf32, #tpu.memory_space<vmem>>, vector<8x1xf32>
    tpu.vector_store %arg5[%c0_6, %c0_7], %9 {strides = array<i32>} : memref<8x1xf32, #tpu.memory_space<vmem>>, vector<8x1xf32>,
    %c0_i32_8 = arith.constant 0 : i32
    %11 = arith.cmpi eq, %arg1, %c0_i32_8 : i32
    %12 = arith.extui %11 : i1 to i32
    %c0_i32_9 = arith.constant 0 : i32
    %13 = arith.cmpi ne, %12, %c0_i32_9 : i32
    scf.if %13 {
      %c0_10 = arith.constant 0 : index
      %c0_11 = arith.constant 0 : index
      %14 = vector.load %arg5[%c0_10, %c0_11] : memref<8x1xf32, #tpu.memory_space<vmem>>, vector<8x1xf32>
      %cst_12 = arith.constant 1.000000e-01 : f32
      %15 = vector.broadcast %cst_12 : f32 to vector<8x1xf32>
      %16 = arith.subf %15, %14 : vector<8x1xf32>
      %cst_13 = arith.constant 0.000000e+00 : f32
      %17 = vector.broadcast %cst_13 : f32 to vector<8x1xf32>
      %18 = arith.maximumf %16, %17 : vector<8x1xf32>
      %c0_14 = arith.constant 0 : index
      %c0_15 = arith.constant 0 : index
      %19 = vector.load %arg4[%c0_14, %c0_15] : memref<8x1xf32, #tpu.memory_space<vmem>>, vector<8x1xf32>
      tpu.vector_store %arg4[%c0_14, %c0_15], %18 {strides = array<i32>} : memref<8x1xf32, #tpu.memory_space<vmem>>, vector<8x1xf32>,
    } else {
    }
    return
  }
  func.func @transform_0(%arg0: i32, %arg1: i32) -> (i32, i32) {
    %c0_i32 = arith.constant 0 : i32
    return %arg0, %arg1 : i32, i32
  }
  func.func @transform_1(%arg0: i32, %arg1: i32) -> (i32, i32) {
    %c0_i32 = arith.constant 0 : i32
    return %arg0, %arg1 : i32, i32
  }
  func.func @transform_2(%arg0: i32, %arg1: i32) -> (i32, i32) {
    %c0_i32 = arith.constant 0 : i32
    %c0_i32_0 = arith.constant 0 : i32
    return %arg0, %c0_i32 : i32, i32
  }
}

</mosaic_0001>

<llo_original>
// kernel: tpu_custom_call.1
$region0: #{tpu_custom_call.1}
  #allocation0 [shape = 'u32[]', space=smem, size = 0x4, offset = 0x4, fixed_abs, tag = 'smem constant byte address 0x4 - core index']
  #allocation1 [shape = 'u32[72,128]{1,0:T(1,128)}', space=vmem, size = 0x9000, scoped, tag = 'internal scratch']
  #allocation2 [shape = 'f32[8,1]{1,0:T(8,128)}', space=vmem, size = 0x1000, scoped, tag = 'scratch operand']
  %s0 = inlined_call_operand.hbm [shape: f32[8,128], index: 0, kind: input, shape index: {}]
  %s1 = inlined_call_operand.hbm [shape: f32[8,128], index: 1, kind: input, shape index: {}]
  %s2 = inlined_call_operand.vmem [shape: f32[8,1], index: 2, kind: output, shape index: {}]
  %s3 = sld [smem:[#allocation0]]
  $region34: #{tpu_custom_call.1} parent=0
    _
  %s5 = ssub.s32 1, %s3
  %s6 = scalar_select 0, %s5, %s3
  $region1: #{tpu_custom_call.1} parent=0
    #allocation3 [shape = 'u8[4096]{0}', space=vmem, size = 0x1000, scoped, tag = 'input window, operand 0, single buffered']
    #allocation4 [shape = 's32[1]{0}', space=sflag, size = 0x4, scoped, tag = 'scoped memory for tpu_custom_call.1']
    #allocation5 [shape = 'u8[4096]{0}', space=vmem, size = 0x1000, scoped, tag = 'input window, operand 1, single buffered']
    #allocation6 [shape = 's32[1]{0}', space=sflag, size = 0x4, scoped, tag = 'scoped memory for tpu_custom_call.1']
    %7 = vsyncpa [#allocation4], 0
    %8 = vsyncpa [#allocation6], 0
    // Predicated region
    $region2: #{tpu_custom_call.1} parent=1 // pred_check
      _
    $region3: #{tpu_custom_call.1} parent=1 // pred_check_branch
      %10 = sbr.rel (0) target = $region5
    $region4: #{tpu_custom_call.1} parent=1 // pred_region
      %12 = vsyncadd [#allocation4], 0
      %s14 = sshll.u32 %s0, 4
      %s15 = int_to_ptr.hbm [resolvable:$true] %s14
      %s16 = sshll.u32 [#allocation3], 4
      %s17 = int_to_ptr.vmem [resolvable:$true] %s16
      %19 = dma.hbm_to_vmem [thread:$0]  %s15, 128, %s17, [#allocation4]
    $region5: #{tpu_custom_call.1} parent=1 // pred_fallthru
      _
    // Predicated region
    $region6: #{tpu_custom_call.1} parent=1 // pred_check
      _
    $region7: #{tpu_custom_call.1} parent=1 // pred_check_branch
      %21 = sbr.rel (0) target = $region9
    $region8: #{tpu_custom_call.1} parent=1 // pred_region
      %23 = vsyncadd [#allocation6], 0
      %s25 = sshll.u32 %s1, 4
      %s26 = int_to_ptr.hbm [resolvable:$true] %s25
      %s27 = sshll.u32 [#allocation5], 4
      %s28 = int_to_ptr.vmem [resolvable:$true] %s27
      %30 = dma.hbm_to_vmem [thread:$0]  %s26, 128, %s28, [#allocation6]
    $region9: #{tpu_custom_call.1} parent=1 // pred_fallthru
      _
    // Predicated region
    $region10: #{tpu_custom_call.1} parent=1 // pred_check
      _
    $region11: #{tpu_custom_call.1} parent=1 // pred_check_branch
      %32 = sbr.rel (0) target = $region13
    $region12: #{tpu_custom_call.1} parent=1 // pred_region
      %34 = dma.done [#allocation4], 128
    $region13: #{tpu_custom_call.1} parent=1 // pred_fallthru
      _
    // Predicated region
    $region14: #{tpu_custom_call.1} parent=1 // pred_check
      _
    $region15: #{tpu_custom_call.1} parent=1 // pred_check_branch
      %36 = sbr.rel (0) target = $region17
    $region16: #{tpu_custom_call.1} parent=1 // pred_region
      %38 = dma.done [#allocation6], 128
    $region17: #{tpu_custom_call.1} parent=1 // pred_fallthru
      _
    %p39 = scmp.eq.s32.totalorder 0, 0
    // Predicated region
    $region18: #{tpu_custom_call.1} parent=1 // pred_check
      %p40 = pneg %p39
    $region19: #{tpu_custom_call.1} parent=1 // pred_check_branch
      %42 = sbr.rel (%p40) target = $region21
    $region20: #{tpu_custom_call.1} parent=1 // pred_region
      %vm43 = vcmask 7168
      %44 = vst.msk [vmem:[#allocation2] sm:$0xff] %vm43, 0.0
    $region21: #{tpu_custom_call.1} parent=1 // pred_fallthru
      _
    %v45 = vld [vmem:[#allocation3] sm:$0xff]
    %v46 = vld [vmem:[#allocation5] sm:$0xff]
    %v47 = vmul.f32 %v45, %v46
    %v48 = vld [vmem:[#allocation2] sm:$0xff]
    %49 = vadd.xlane.f32.xlu0 %v47
    %v50 = vpop.xlane.xlu0 %49
    %v51 = vadd.f32 %v48, %v50
    %vm52 = vcmask 7168
    %53 = vst.msk [vmem:[#allocation2] sm:$0xff] %vm52, %v51
    // Predicated region
    $region22: #{tpu_custom_call.1} parent=1 // pred_check
      %p54 = pneg %p39
    $region23: #{tpu_custom_call.1} parent=1 // pred_check_branch
      %56 = sbr.rel (%p54) target = $region25
    $region24: #{tpu_custom_call.1} parent=1 // pred_region
      %v57 = vld [vmem:[#allocation2] sm:$0xff]
      %v58 = vsub.f32 0.1, %v57
      %v59 = vmax.f32 %v58, 0.0
      %60 = vst.msk [vmem:[%s2] sm:$0xff] %vm52, %v59
    $region25: #{tpu_custom_call.1} parent=1 // pred_fallthru
      _
    // Predicated region
    $region26: #{tpu_custom_call.1} parent=1 // pred_check
      _
    $region27: #{tpu_custom_call.1} parent=1 // pred_check_branch
      %62 = sbr.rel (0) target = $region29
    $region28: #{tpu_custom_call.1} parent=1 // pred_region
      _
    $region29: #{tpu_custom_call.1} parent=1 // pred_fallthru
      _
    // Predicated region
    $region30: #{tpu_custom_call.1} parent=1 // pred_check
      _
    $region31: #{tpu_custom_call.1} parent=1 // pred_check_branch
      %64 = sbr.rel (0) target = $region33
    $region32: #{tpu_custom_call.1} parent=1 // pred_region
      _
    $region33: #{tpu_custom_call.1} parent=1 // pred_fallthru
      _
    %65 = vsyncpa [#allocation4], 1
    %66 = vsyncpa [#allocation6], 1

</llo_original>
